<compile_context>
chip_gen: v5e
topology: v5e:2x2
jax: 0.10.0
libtpu: 0.0.40
codegen_flags: <defaults>
</compile_context>

<pallas_src>
from collections import namedtuple

import numpy as np
import jax
import jax.numpy as jnp
from jax.experimental import pallas as pl
from jax.experimental.pallas import tpu as pltpu  # noqa: F401  (kept for TPU-specific tuning)

# ----------------------------------------------------------------------------------
# Synthetic SMPL configuration (small shapes, deterministic init -- no checkpoint load)
# ----------------------------------------------------------------------------------
B = 2                         # batch  (TODO(synk): fold a real batch >=8 into the MXU M dim)
V = 128                       # number of vertices (lane aligned)
NUM_BODY_JOINTS = 23
J = NUM_BODY_JOINTS + 1       # 24 joints incl. root
NUM_BETAS = 10
P = NUM_BODY_JOINTS * 9       # 207 pose-blend basis entries
BP = NUM_BETAS + P            # 217 = width of (betas || pose_feature)
NUM_FACES = 64                # synthetic faces
N_EXTRA = 21                  # extra vertex-joints selected by VertexJointSelector
JP = 128                      # lane-padded width of the joints output (3*J = 72 -> 128)

# real SMPL kinematic tree (parent of each of the 24 joints)
PARENTS = np.array([-1, 0, 0, 0, 1, 2, 3, 4, 5, 6, 7, 8,
                    9, 9, 9, 12, 13, 14, 16, 17, 18, 19, 20, 21], dtype=np.int32)


def _tree_levels(parents):
    depth = np.zeros(len(parents), np.int64)
    for i in range(1, len(parents)):
        depth[i] = depth[parents[i]] + 1
    return [[int(i) for i in np.nonzero(depth == d)[0]]
            for d in range(1, int(depth.max()) + 1)]


LEVELS = _tree_levels(PARENTS)   # ~8 levels for the SMPL tree

ModelOutput = namedtuple(
    'ModelOutput',
    ['vertices', 'faces', 'joints', 'full_pose', 'betas', 'global_orient',
     'body_pose', 'expression', 'left_hand_pose', 'right_hand_pose', 'jaw_pose',
     'T', 'T_weighted', 'weights'],
    defaults=(None,) * 14)


# ----------------------------------------------------------------------------------
# Pallas kernel 1: fused shape+pose blendshapes + rest-joint regression (single call)
# ----------------------------------------------------------------------------------
def _blend_kernel(bp_ref, bd_ref, vt_ref, jd_ref, jt_ref, vph_ref, joints_ref):
    bp = bp_ref[...]                                                    # (B, 217) f32
    # one bf16 MXU dot for BOTH blendshapes, coordinates folded into N (col = c*V + v)
    vp = vt_ref[...] + jnp.dot(bp.astype(jnp.bfloat16), bd_ref[...],
                               preferred_element_type=jnp.float32)      # (B, 3V) f32
    # write v_posed straight into the (3B, V) homogeneous-slab layout (row = c*B + b)
    for c in range(3):
        vph_ref[c * B:(c + 1) * B, :] = vp[:, c * V:(c + 1) * V]
    # rest-joint regression folded onto betas (J_regressor absorbed at model-load time)
    joints_ref[...] = jt_ref[...] + jnp.dot(bp[:, :NUM_BETAS], jd_ref[...],
                                            preferred_element_type=jnp.float32)  # (B, JP)


def blend_and_regress(bp, blenddirs, v_template_w, jdirs, jtpl):
    """bp (B,217) f32; blenddirs (217,3V) bf16; v_template_w (1,3V); jdirs (10,JP); jtpl (1,JP).
       Returns v_posed slab (3B,V) [row = c*B+b], joints_padded (B,JP) [col = c*J+j]."""
    # TODO(synk): at real V tile the 3V lane axis with a grid + vmem_limit_bytes.
    return pl.pallas_call(
        _blend_kernel,
        out_shape=(jax.ShapeDtypeStruct((3 * B, V), jnp.float32),
                   jax.ShapeDtypeStruct((B, JP), jnp.float32)),
    )(bp, blenddirs, v_template_w, jdirs, jtpl)


# ----------------------------------------------------------------------------------
# Pallas kernel 2: linear blend skinning (single call; one MXU dot + pure VPU slab math)
# ----------------------------------------------------------------------------------
def _skin_kernel(vph_ref, w_ref, a_ref, verts_ref, T_ref):
    # per-vertex flattened transforms: row = k*4B + r*B + b  ->  T[b, v, r, k]
    T_all = jnp.dot(a_ref[...], w_ref[...],
                    preferred_element_type=jnp.float32)                 # (16B, V) = (32,128)
    T_ref[...] = T_all

    vph = vph_ref[...]                                                  # (3B, V), row c*B+b
    # homogeneous transform with contiguous, tile-aligned sublane slabs (no selector matmuls):
    #   verts[r*B+b, v] = T[b,v,r,3] + sum_c T[b,v,r,c] * v_posed[b,v,c]
    acc = T_all[3 * 4 * B:4 * 4 * B, :]                                 # translation column (w==1)
    for c in range(3):
        vk = vph[c * B:(c + 1) * B, :]                                  # (B, V) coordinate c
        vk4 = jnp.concatenate([vk, vk, vk, vk], axis=0)                 # (4B, V), row r*B+b
        acc = acc + T_all[c * 4 * B:(c + 1) * 4 * B, :] * vk4
    verts_ref[...] = acc                                                # (4B, V) = (8,128)


def skin(vph, lbsW_T, A_flat):
    """vph (3B,V); lbsW_T (J,V); A_flat (16B,J) row = k*4B + r*B + b.
       Returns verts (4B,V) row = r*B+b, T_all (16B,V) row = k*4B + r*B + b."""
    return pl.pallas_call(
        _skin_kernel,
        out_shape=(jax.ShapeDtypeStruct((4 * B, V), jnp.float32),
                   jax.ShapeDtypeStruct((16 * B, V), jnp.float32)),
    )(vph, lbsW_T, A_flat)


# ----------------------------------------------------------------------------------
# Plain-JAX glue (Rodrigues, depth-batched kinematic chain) -- runs under jit
# ----------------------------------------------------------------------------------
def batch_rodrigues(rot_vecs, epsilon=1e-8):
    angle = jnp.linalg.norm(rot_vecs + epsilon, axis=1, keepdims=True)       # (N,1)
    rot_dir = rot_vecs / angle
    cos = jnp.cos(angle)[:, None, :]
    sin = jnp.sin(angle)[:, None, :]
    rx, ry, rz = rot_dir[:, 0], rot_dir[:, 1], rot_dir[:, 2]
    zeros = jnp.zeros_like(rx)
    K = jnp.stack([zeros, -rz, ry, rz, zeros, -rx, -ry, rx, zeros],
                  axis=1).reshape(-1, 3, 3)
    ident = jnp.eye(3, dtype=rot_vecs.dtype)[None]
    return ident + sin * K + (1.0 - cos) * jnp.matmul(K, K)


def _make_transforms_mat(rot_mats, joints, parents):
    bsz, nj = joints.shape[:2]
    rel_joints = jnp.concatenate(
        [joints[:, :1], joints[:, 1:] - joints[:, parents[1:]]], axis=1)
    top = jnp.concatenate([rot_mats, rel_joints[..., None]], axis=-1)        # (B,J,3,4)
    bottom = jnp.broadcast_to(
        jnp.array([0., 0., 0., 1.], dtype=rot_mats.dtype), (bsz, nj, 1, 4))
    return jnp.concatenate([top, bottom], axis=2)                            # (B,J,4,4)


def _finish_rigid(transforms, joints):
    bsz, nj = joints.shape[:2]
    posed_joints = transforms[:, :, :3, 3]
    joints_h = jnp.concatenate(
        [joints, jnp.zeros_like(joints[..., :1])], axis=-1)[..., None]       # (B,J,4,1)
    tj = jnp.matmul(transforms, joints_h)                                    # (B,J,4,1)
    rel = transforms - jnp.concatenate(
        [jnp.zeros((bsz, nj, 4, 3), transforms.dtype), tj], axis=-1)
    return posed_joints, rel


def batch_rigid_transform(rot_mats, joints, parents):
    """Depth-batched kinematic chain: one (B, n_level, 4, 4) matmul per tree level
    (~8 serial steps) instead of 23 serial per-joint matmuls."""
    nj = joints.shape[1]
    tm = _make_transforms_mat(rot_mats, joints, parents)
    chain = [None] * nj
    chain[0] = tm[:, 0]
    for level in LEVELS:
        parG = jnp.stack([chain[int(parents[j])] for j in level], axis=1)    # (B, n, 4, 4)
        locT = jnp.stack([tm[:, j] for j in level], axis=1)                  # (B, n, 4, 4)
        res = jnp.matmul(parG, locT)
        for idx, j in enumerate(level):
            chain[j] = res[:, idx]
    transforms = jnp.stack(chain, axis=1)                                    # (B,J,4,4)
    return _finish_rigid(transforms, joints)


def batch_rigid_transform_seq(rot_mats, joints, parents):
    """Sequential reference chain (used only by the pure-JAX verification path)."""
    nj = joints.shape[1]
    tm = _make_transforms_mat(rot_mats, joints, parents)
    chain = [tm[:, 0]]
    for i in range(1, nj):
        chain.append(jnp.matmul(chain[int(parents[i])], tm[:, i]))
    transforms = jnp.stack(chain, axis=1)
    return _finish_rigid(transforms, joints)


# ----------------------------------------------------------------------------------
# Model preparation: hoisted, load-time layout transposes / weight folding
# ----------------------------------------------------------------------------------
def prepare_model(v_template, shapedirs, posedirs, J_regressor, lbs_weights):
    # shape + pose blendshape bases fused into one bf16 weight, coordinate folded into N (c*V+v)
    sd_w = jnp.transpose(shapedirs, (2, 1, 0)).reshape(NUM_BETAS, 3 * V)       # (10, 3V)
    pd_w = jnp.transpose(posedirs, (0, 2, 1)).reshape(P, 3 * V)                # (207, 3V)
    blenddirs = jnp.concatenate([sd_w, pd_w], axis=0).astype(jnp.bfloat16)     # (217, 3V) bf16
    v_template_w = jnp.transpose(v_template).reshape(1, 3 * V)                 # (1, 3V) f32

    # rest-joint regression folded onto the betas: J_rest = jtpl + betas @ jdirs (col = c*J+j)
    jdirs = jnp.einsum('jv,vcl->lcj', J_regressor, shapedirs).reshape(NUM_BETAS, 3 * J)
    jtpl = jnp.einsum('jv,vc->cj', J_regressor, v_template).reshape(1, 3 * J)
    jdirs = jnp.pad(jdirs, ((0, 0), (0, JP - 3 * J)))                          # (10, 128) f32
    jtpl = jnp.pad(jtpl, ((0, 0), (0, JP - 3 * J)))                            # (1, 128) f32

    lbsW_T = jnp.transpose(lbs_weights)                                        # (J, V) f32
    return dict(blenddirs=blenddirs, v_template_w=v_template_w, jdirs=jdirs,
                jtpl=jtpl, lbsW_T=lbsW_T, lbs_weights=lbs_weights)


# ----------------------------------------------------------------------------------
# SMPL forward (jitted end-to-end)
# ----------------------------------------------------------------------------------
def _smpl_forward(model, betas, body_pose, global_orient, transl, faces,
                  extra_vertex_ids, pose_blend=True, return_full_pose=False):
    full_pose = jnp.concatenate([global_orient, body_pose], axis=1)          # (B, 72)

    # pose-only glue (independent of the blendshape kernel)
    rot_mats = batch_rodrigues(full_pose.reshape(-1, 3)).reshape(B, J, 3, 3)
    pose_feature = (rot_mats[:, 1:] - jnp.eye(3, dtype=jnp.float32)).reshape(B, -1)
    if not pose_blend:
        pose_feature = jnp.zeros_like(pose_feature)
    bp = jnp.concatenate([betas, pose_feature], axis=1)                      # (B, 217)

    # Pallas kernel 1: fused shape+pose blendshapes + rest-joint regression
    vph, joints_p = blend_and_regress(bp, model['blenddirs'], model['v_template_w'],
                                      model['jdirs'], model['jtpl'])
    J_rest = jnp.transpose(joints_p[:, :3 * J].reshape(B, 3, J), (0, 2, 1))  # (B, J, 3)

    # depth-batched kinematic chain (plain JAX, tiny)
    J_transformed, A = batch_rigid_transform(rot_mats, J_rest, PARENTS)

    # flatten A to (16B, J): row = k*4B + r*B + b  (matches the skin kernel's slab layout)
    A_flat = jnp.transpose(A, (3, 2, 0, 1)).reshape(16 * B, J)

    # Pallas kernel 2: LBS skinning
    verts_rows, T_all = skin(vph, model['lbsW_T'], A_flat)

    vertices = jnp.transpose(verts_rows.reshape(4, B, V)[:3], (1, 2, 0))     # (B, V, 3)
    T_weighted = jnp.transpose(T_all.reshape(4, 4, B, V), (2, 3, 1, 0))      # (B, V, 4, 4)
    W = jnp.broadcast_to(model['lbs_weights'][None], (B, V, J))

    # VertexJointSelector: mirrors the PyTorch module; as in the module, output.joints stays
    # joints_smpl (the augmented set only feeds an optional joint_mapper, which is None here).
    extra_joints = vertices[:, extra_vertex_ids]                             # (B, N_EXTRA, 3)
    joints = jnp.concatenate([J_transformed, extra_joints], axis=1)

    # apply translation
    joints_smpl = J_transformed + transl[:, None, :]
    joints = joints + transl[:, None, :]
    vertices = vertices + transl[:, None, :]

    # TODO(synk): faces are int32 here (PyTorch registers int64); x64 disabled in JAX by default.
    return ModelOutput(vertices=vertices, faces=faces, joints=joints_smpl,
                       full_pose=full_pose if return_full_pose else None,
                       betas=betas, global_orient=global_orient, body_pose=body_pose,
                       T=A, T_weighted=T_weighted, weights=W)


smpl_forward = jax.jit(_smpl_forward, static_argnames=('pose_blend', 'return_full_pose'))


# pure-JAX reference of smplx.lbs (sequential chain) for verification
def lbs_reference(betas, full_pose, v_template, shapedirs, posedirs,
                  J_regressor, lbs_weights, pose_blend=True):
    v_shaped = v_template[None] + jnp.einsum('bl,vkl->bvk', betas, shapedirs)
    J_rest = jnp.einsum('jv,bvk->bjk', J_regressor, v_shaped)
    rot_mats = batch_rodrigues(full_pose.reshape(-1, 3)).reshape(B, J, 3, 3)
    pose_feature = (rot_mats[:, 1:] - jnp.eye(3, dtype=jnp.float32)).reshape(B, -1)
    pose_offsets = jnp.einsum('bp,pvk->bvk', pose_feature, posedirs)
    v_posed = v_shaped + pose_offsets if pose_blend else v_shaped
    J_transformed, A = batch_rigid_transform_seq(rot_mats, J_rest, PARENTS)
    T = jnp.einsum('vj,bjmn->bvmn', lbs_weights, A)
    v_h = jnp.concatenate([v_posed, jnp.ones_like(v_posed[..., :1])], axis=-1)
    verts = jnp.einsum('bvmn,bvn->bvm', T, v_h)[..., :3]
    return verts, J_transformed, T


if __name__ == "__main__":
    key = jax.random.PRNGKey(0)
    ks = jax.random.split(key, 10)

    # deterministic synthetic model buffers (shapes mirror SMPL's registered buffers)
    v_template = jax.random.normal(ks[0], (V, 3), jnp.float32) * 0.5
    shapedirs = jax.random.normal(ks[1], (V, 3, NUM_BETAS), jnp.float32) * 0.01
    posedirs = jax.random.normal(ks[2], (P, V, 3), jnp.float32) * 0.01
    J_regressor = jax.nn.softmax(jax.random.normal(ks[3], (J, V), jnp.float32), axis=-1)
    lbs_weights = jax.nn.softmax(jax.random.normal(ks[4], (V, J), jnp.float32) * 2.0, axis=-1)
    faces = jax.random.randint(ks[5], (NUM_FACES, 3), 0, V, dtype=jnp.int32)
    extra_vertex_ids = jnp.asarray(
        np.array([(i * 6 + 1) % V for i in range(N_EXTRA)], dtype=np.int32))

    # forward inputs (would be the nn.Parameters / external predictions in PyTorch)
    betas = jax.random.normal(ks[6], (B, NUM_BETAS), jnp.float32) * 0.1
    global_orient = jax.random.normal(ks[7], (B, 3), jnp.float32) * 0.2
    body_pose = jax.random.normal(ks[8], (B, NUM_BODY_JOINTS * 3), jnp.float32) * 0.2
    transl = jax.random.normal(ks[9], (B, 3), jnp.float32) * 0.1

    # model-load-time layout preparation (hoisted out of the forward pass)
    model = prepare_model(v_template, shapedirs, posedirs, J_regressor, lbs_weights)

    out = smpl_forward(model, betas, body_pose, global_orient, transl, faces,
                       extra_vertex_ids, pose_blend=True)
    jax.block_until_ready(out.vertices)

    # verify against pure-JAX reference
    full_pose = jnp.concatenate([global_orient, body_pose], axis=1)
    verts_ref, joints_ref, T_ref = lbs_reference(
        betas, full_pose, v_template, shapedirs, posedirs, J_regressor, lbs_weights)
    verts_ref = verts_ref + transl[:, None, :]
    joints_ref = joints_ref + transl[:, None, :]

    ok = (jnp.allclose(out.vertices, verts_ref, atol=2e-3, rtol=2e-3)
          and jnp.allclose(out.joints, joints_ref, atol=2e-3, rtol=2e-3)
          and jnp.allclose(out.T_weighted, T_ref, atol=2e-3, rtol=2e-3))
    assert bool(ok), "Pallas SMPL output does not match reference"
    print("KERNEL_OK")
</pallas_src>

<mosaic_0001>
module attributes {stable_mosaic.version = 11 : i64} {
  func.func @_blend_kernel(%arg0: memref<2x217xf32, #tpu.memory_space<vmem>>, %arg1: memref<217x384xbf16, #tpu.memory_space<vmem>>, %arg2: memref<1x384xf32, #tpu.memory_space<vmem>>, %arg3: memref<10x128xf32, #tpu.memory_space<vmem>>, %arg4: memref<1x128xf32, #tpu.memory_space<vmem>>, %arg5: memref<6x128xf32, #tpu.memory_space<vmem>>, %arg6: memref<2x128xf32, #tpu.memory_space<vmem>>) attributes {dimension_semantics = [], scalar_prefetch = 0 : i64, scratch_operands = 0 : i64, tpu.core_type = #tpu.core_type<tc>} {
    %c0 = arith.constant 0 : index
    %c0_0 = arith.constant 0 : index
    %0 = vector.load %arg0[%c0, %c0_0] : memref<2x217xf32, #tpu.memory_space<vmem>>, vector<2x217xf32>
    %c0_1 = arith.constant 0 : index
    %c0_2 = arith.constant 0 : index
    %1 = vector.load %arg2[%c0_1, %c0_2] : memref<1x384xf32, #tpu.memory_space<vmem>>, vector<1x384xf32>
    %2 = arith.truncf %0 : vector<2x217xf32> to vector<2x217xbf16>
    %c0_3 = arith.constant 0 : index
    %c0_4 = arith.constant 0 : index
    %3 = vector.load %arg1[%c0_3, %c0_4] : memref<217x384xbf16, #tpu.memory_space<vmem>>, vector<217x384xbf16>
    %cst = arith.constant dense<0.000000e+00> : vector<2x384xf32>
    %4 = tpu.matmul %2, %3, %cst {dimension_numbers = #tpu.dot_dimension_numbers<[1], [0], [0], [1], [0, 0, 1, 1], [], []>} : vector<2x217xbf16>, vector<217x384xbf16>, vector<2x384xf32> -> vector<2x384xf32>
    %5 = vector.broadcast %1 : vector<1x384xf32> to vector<2x384xf32>
    %6 = arith.addf %5, %4 : vector<2x384xf32>
    %7 = vector.extract_strided_slice %6 {offsets = [0, 0], sizes = [2, 128], strides = [1, 1]} : vector<2x384xf32> to vector<2x128xf32>
    %c0_5 = arith.constant 0 : index
    %c0_6 = arith.constant 0 : index
    %8 = vector.load %arg5[%c0_5, %c0_6] : memref<6x128xf32, #tpu.memory_space<vmem>>, vector<2x128xf32>
    tpu.vector_store %arg5[%c0_5, %c0_6], %7 {strides = array<i32>} : memref<6x128xf32, #tpu.memory_space<vmem>>, vector<2x128xf32>,
    %9 = vector.extract_strided_slice %6 {offsets = [0, 128], sizes = [2, 128], strides = [1, 1]} : vector<2x384xf32> to vector<2x128xf32>
    %c2 = arith.constant 2 : index
    %c0_7 = arith.constant 0 : index
    %10 = vector.load %arg5[%c2, %c0_7] : memref<6x128xf32, #tpu.memory_space<vmem>>, vector<2x128xf32>
    tpu.vector_store %arg5[%c2, %c0_7], %9 {strides = array<i32>} : memref<6x128xf32, #tpu.memory_space<vmem>>, vector<2x128xf32>,
    %11 = vector.extract_strided_slice %6 {offsets = [0, 256], sizes = [2, 128], strides = [1, 1]} : vector<2x384xf32> to vector<2x128xf32>
    %c4 = arith.constant 4 : index
    %c0_8 = arith.constant 0 : index
    %12 = vector.load %arg5[%c4, %c0_8] : memref<6x128xf32, #tpu.memory_space<vmem>>, vector<2x128xf32>
    tpu.vector_store %arg5[%c4, %c0_8], %11 {strides = array<i32>} : memref<6x128xf32, #tpu.memory_space<vmem>>, vector<2x128xf32>,
    %c0_9 = arith.constant 0 : index
    %c0_10 = arith.constant 0 : index
    %13 = vector.load %arg4[%c0_9, %c0_10] : memref<1x128xf32, #tpu.memory_space<vmem>>, vector<1x128xf32>
    %14 = vector.extract_strided_slice %0 {offsets = [0, 0], sizes = [2, 10], strides = [1, 1]} : vector<2x217xf32> to vector<2x10xf32>
    %c0_11 = arith.constant 0 : index
    %c0_12 = arith.constant 0 : index
    %15 = vector.load %arg3[%c0_11, %c0_12] : memref<10x128xf32, #tpu.memory_space<vmem>>, vector<10x128xf32>
    %cst_13 = arith.constant dense<0.000000e+00> : vector<2x128xf32>
    %16 = tpu.matmul %14, %15, %cst_13 {dimension_numbers = #tpu.dot_dimension_numbers<[1], [0], [0], [1], [0, 0, 1, 1], [], []>} : vector<2x10xf32>, vector<10x128xf32>, vector<2x128xf32> -> vector<2x128xf32>
    %17 = vector.broadcast %13 : vector<1x128xf32> to vector<2x128xf32>
    %18 = arith.addf %17, %16 : vector<2x128xf32>
    %c0_14 = arith.constant 0 : index
    %c0_15 = arith.constant 0 : index
    %19 = vector.load %arg6[%c0_14, %c0_15] : memref<2x128xf32, #tpu.memory_space<vmem>>, vector<2x128xf32>
    tpu.vector_store %arg6[%c0_14, %c0_15], %18 {strides = array<i32>} : memref<2x128xf32, #tpu.memory_space<vmem>>, vector<2x128xf32>,
    return
  }
}

module attributes {stable_mosaic.version = 11 : i64} {
  func.func @_skin_kernel(%arg0: memref<6x128xf32, #tpu.memory_space<vmem>>, %arg1: memref<24x128xf32, #tpu.memory_space<vmem>>, %arg2: memref<32x24xf32, #tpu.memory_space<vmem>>, %arg3: memref<8x128xf32, #tpu.memory_space<vmem>>, %arg4: memref<32x128xf32, #tpu.memory_space<vmem>>) attributes {dimension_semantics = [], scalar_prefetch = 0 : i64, scratch_operands = 0 : i64, tpu.core_type = #tpu.core_type<tc>} {
    %c0 = arith.constant 0 : index
    %c0_0 = arith.constant 0 : index
    %0 = vector.load %arg2[%c0, %c0_0] : memref<32x24xf32, #tpu.memory_space<vmem>>, vector<32x24xf32>
    %c0_1 = arith.constant 0 : index
    %c0_2 = arith.constant 0 : index
    %1 = vector.load %arg1[%c0_1, %c0_2] : memref<24x128xf32, #tpu.memory_space<vmem>>, vector<24x128xf32>
    %cst = arith.constant dense<0.000000e+00> : vector<32x128xf32>
    %2 = tpu.matmul %0, %1, %cst {dimension_numbers = #tpu.dot_dimension_numbers<[1], [0], [0], [1], [0, 0, 1, 1], [], []>} : vector<32x24xf32>, vector<24x128xf32>, vector<32x128xf32> -> vector<32x128xf32>
    %c0_3 = arith.constant 0 : index
    %c0_4 = arith.constant 0 : index
    %3 = vector.load %arg4[%c0_3, %c0_4] : memref<32x128xf32, #tpu.memory_space<vmem>>, vector<32x128xf32>
    tpu.vector_store %arg4[%c0_3, %c0_4], %2 {strides = array<i32>} : memref<32x128xf32, #tpu.memory_space<vmem>>, vector<32x128xf32>,
    %c0_5 = arith.constant 0 : index
    %c0_6 = arith.constant 0 : index
    %4 = vector.load %arg0[%c0_5, %c0_6] : memref<6x128xf32, #tpu.memory_space<vmem>>, vector<6x128xf32>
    %5 = vector.extract_strided_slice %2 {offsets = [24, 0], sizes = [8, 128], strides = [1, 1]} : vector<32x128xf32> to vector<8x128xf32>
    %6 = vector.extract_strided_slice %4 {offsets = [0, 0], sizes = [2, 128], strides = [1, 1]} : vector<6x128xf32> to vector<2x128xf32>
    %7 = tpu.concatenate %6, %6, %6, %6 in 0 : vector<2x128xf32>, vector<2x128xf32>, vector<2x128xf32>, vector<2x128xf32> -> vector<8x128xf32>
    %8 = vector.extract_strided_slice %2 {offsets = [0, 0], sizes = [8, 128], strides = [1, 1]} : vector<32x128xf32> to vector<8x128xf32>
    %9 = arith.mulf %8, %7 : vector<8x128xf32>
    %10 = arith.addf %5, %9 : vector<8x128xf32>
    %11 = vector.extract_strided_slice %4 {offsets = [2, 0], sizes = [2, 128], strides = [1, 1]} : vector<6x128xf32> to vector<2x128xf32>
    %12 = tpu.concatenate %11, %11, %11, %11 in 0 : vector<2x128xf32>, vector<2x128xf32>, vector<2x128xf32>, vector<2x128xf32> -> vector<8x128xf32>
    %13 = vector.extract_strided_slice %2 {offsets = [8, 0], sizes = [8, 128], strides = [1, 1]} : vector<32x128xf32> to vector<8x128xf32>
    %14 = arith.mulf %13, %12 : vector<8x128xf32>
    %15 = arith.addf %10, %14 : vector<8x128xf32>
    %16 = vector.extract_strided_slice %4 {offsets = [4, 0], sizes = [2, 128], strides = [1, 1]} : vector<6x128xf32> to vector<2x128xf32>
    %17 = tpu.concatenate %16, %16, %16, %16 in 0 : vector<2x128xf32>, vector<2x128xf32>, vector<2x128xf32>, vector<2x128xf32> -> vector<8x128xf32>
    %18 = vector.extract_strided_slice %2 {offsets = [16, 0], sizes = [8, 128], strides = [1, 1]} : vector<32x128xf32> to vector<8x128xf32>
    %19 = arith.mulf %18, %17 : vector<8x128xf32>
    %20 = arith.addf %15, %19 : vector<8x128xf32>
    %c0_7 = arith.constant 0 : index
    %c0_8 = arith.constant 0 : index
    %21 = vector.load %arg3[%c0_7, %c0_8] : memref<8x128xf32, #tpu.memory_space<vmem>>, vector<8x128xf32>
    tpu.vector_store %arg3[%c0_7, %c0_8], %20 {strides = array<i32>} : memref<8x128xf32, #tpu.memory_space<vmem>>, vector<8x128xf32>,
    return
  }
}

</mosaic_0001>

<llo_original>
// kernel: _smpl_forward.2
$region0: #{_smpl_forward.2}
  #allocation0 [shape = 'u32[]', space=smem, size = 0x4, offset = 0x4, fixed_abs, tag = 'smem constant byte address 0x4 - core index']
  #allocation1 [shape = 'u32[72,128]{1,0:T(1,128)}', space=vmem, size = 0x9000, scoped, tag = 'internal scratch']
  %s0 = inlined_call_operand.vmem [shape: f32[2,217], index: 0, kind: input, shape index: {}]
  %s1 = inlined_call_operand.vmem [shape: bf16[217,384], index: 1, kind: input, shape index: {}]
  %s2 = inlined_call_operand.vmem [shape: f32[1,384], index: 2, kind: input, shape index: {}]
  %s3 = inlined_call_operand.vmem [shape: f32[10,128], index: 3, kind: input, shape index: {}]
  %s4 = inlined_call_operand.vmem [shape: f32[1,128], index: 4, kind: input, shape index: {}]
  %s5 = inlined_call_operand.vmem [shape: f32[6,128], index: 5, kind: output, shape index: {0}]
  %s6 = inlined_call_operand.vmem [shape: f32[2,128], index: 6, kind: output, shape index: {1}]
  %7 = xla_tuple %s5, %s6
  %s8 = sld [smem:[#allocation0]]
  $region38: #{_smpl_forward.2} parent=0
    _
  %s10 = ssub.s32 1, %s8
  %s11 = scalar_select 0, %s10, %s8
  // Predicated region
  $region2: #{_smpl_forward.2} parent=0 // pred_check
    _
  $region3: #{_smpl_forward.2} parent=0 // pred_check_branch
    %13 = sbr.rel (0) target = $region5
  $region4: #{_smpl_forward.2} parent=0 // pred_region
    _
  $region5: #{_smpl_forward.2} parent=0 // pred_fallthru
    _
  // Predicated region
  $region6: #{_smpl_forward.2} parent=0 // pred_check
    _
  $region7: #{_smpl_forward.2} parent=0 // pred_check_branch
    %15 = sbr.rel (0) target = $region9
  $region8: #{_smpl_forward.2} parent=0 // pred_region
    _
  $region9: #{_smpl_forward.2} parent=0 // pred_fallthru
    _
  // Predicated region
  $region10: #{_smpl_forward.2} parent=0 // pred_check
    _
  $region11: #{_smpl_forward.2} parent=0 // pred_check_branch
    %17 = sbr.rel (0) target = $region13
  $region12: #{_smpl_forward.2} parent=0 // pred_region
    _
  $region13: #{_smpl_forward.2} parent=0 // pred_fallthru
    _
  // Predicated region
  $region14: #{_smpl_forward.2} parent=0 // pred_check
    _
  $region15: #{_smpl_forward.2} parent=0 // pred_check_branch
    %19 = sbr.rel (0) target = $region17
  $region16: #{_smpl_forward.2} parent=0 // pred_region
    _
  $region17: #{_smpl_forward.2} parent=0 // pred_fallthru
    _
  // Predicated region
  $region18: #{_smpl_forward.2} parent=0 // pred_check
    _
  $region19: #{_smpl_forward.2} parent=0 // pred_check_branch
    %21 = sbr.rel (0) target = $region21
  $region20: #{_smpl_forward.2} parent=0 // pred_region
    _
  $region21: #{_smpl_forward.2} parent=0 // pred_fallthru
    _
  %v23 = vld [vmem:[%s0] sm:$0xf]
  %v24 = vld [vmem:[%s2] sm:$0x7]
  %26 = vst [vmem:[#allocation1] ss:$4 sm:$0xff] %v23
  %v27 = vld.sshfl [vmem:[#allocation1] sm:$0xff pattern:$0x73625140]
  %v28 = vld.sshfl [vmem:[#allocation1 + $0x8] sm:$0xff pattern:$0x73625140]
  %v31 = vpack.c.bf16 %v27, %v27
  %v32 = vpack.c.bf16 %v28, %v28
  %v33 = vld [vmem:[%s1] sm:$0xff]
  %v34 = vld [vmem:[%s1 + $0x8] sm:$0xf]
  %v35 = vld [vmem:[%s1 + $0xc] sm:$0xff]
  %v36 = vld [vmem:[%s1 + $0x14] sm:$0xf]
  %v37 = vld [vmem:[%s1 + $0x18] sm:$0xff]
  %v38 = vld [vmem:[%s1 + $0x20] sm:$0xf]
  %v39 = vld [vmem:[%s1 + $0x24] sm:$0xff]
  %v40 = vld [vmem:[%s1 + $0x2c] sm:$0xf]
  %v41 = vld [vmem:[%s1 + $0x30] sm:$0xff]
  %v42 = vld [vmem:[%s1 + $0x38] sm:$0xf]
  %v43 = vld [vmem:[%s1 + $0x3c] sm:$0xff]
  %v44 = vld [vmem:[%s1 + $0x44] sm:$0xf]
  %v45 = vld [vmem:[%s1 + $0x48] sm:$0xff]
  %v46 = vld [vmem:[%s1 + $0x50] sm:$0xf]
  %v47 = vld [vmem:[%s1 + $0x54] sm:$0xff]
  %v48 = vld [vmem:[%s1 + $0x5c] sm:$0xf]
  %v49 = vld [vmem:[%s1 + $0x60] sm:$0xff]
  %v50 = vld [vmem:[%s1 + $0x68] sm:$0xf]
  %v51 = vld [vmem:[%s1 + $0x6c] sm:$0xff]
  %v52 = vld [vmem:[%s1 + $0x74] sm:$0xf]
  %v53 = vld [vmem:[%s1 + $0x78] sm:$0xff]
  %v54 = vld [vmem:[%s1 + $0x80] sm:$0xf]
  %v55 = vld [vmem:[%s1 + $0x84] sm:$0xff]
  %v56 = vld [vmem:[%s1 + $0x8c] sm:$0xf]
  %v57 = vld [vmem:[%s1 + $0x90] sm:$0xff]
  %v58 = vld [vmem:[%s1 + $0x98] sm:$0xf]
  %v59 = vld [vmem:[%s1 + $0x9c] sm:$0xff]
  %v60 = vld [vmem:[%s1 + $0xa4] sm:$0xf]
  %v61 = vld [vmem:[%s1 + $0xa8] sm:$0xff]
  %v62 = vld [vmem:[%s1 + $0xb0] sm:$0xf]
  %v63 = vld [vmem:[%s1 + $0xb4] sm:$0xff]
  %v64 = vld [vmem:[%s1 + $0xbc] sm:$0xf]
  %v65 = vld [vmem:[%s1 + $0xc0] sm:$0xff]
  %v66 = vld [vmem:[%s1 + $0xc8] sm:$0xf]
  %v67 = vld [vmem:[%s1 + $0xcc] sm:$0xff]
  %v68 = vld [vmem:[%s1 + $0xd4] sm:$0xf]
  %v69 = vld [vmem:[%s1 + $0xd8] sm:$0xff]
  %v70 = vld [vmem:[%s1 + $0xe0] sm:$0xf]
  %v71 = vld [vmem:[%s1 + $0xe4] sm:$0xff]
  %v72 = vld [vmem:[%s1 + $0xec] sm:$0xf]
  %v73 = vld [vmem:[%s1 + $0xf0] sm:$0xff]
  %v74 = vld [vmem:[%s1 + $0xf8] sm:$0xf]
  %v75 = vld [vmem:[%s1 + $0xfc] sm:$0xff]
  %v76 = vld [vmem:[%s1 + $0x104] sm:$0xf]
  %v77 = vld [vmem:[%s1 + $0x108] sm:$0xff]
  %v78 = vld [vmem:[%s1 + $0x110] sm:$0xf]
  %v79 = vld [vmem:[%s1 + $0x114] sm:$0xff]
  %v80 = vld [vmem:[%s1 + $0x11c] sm:$0xf]
  %v81 = vld [vmem:[%s1 + $0x120] sm:$0xff]
  %v82 = vld [vmem:[%s1 + $0x128] sm:$0xf]
  %v83 = vld [vmem:[%s1 + $0x12c] sm:$0xff]
  %v84 = vld [vmem:[%s1 + $0x134] sm:$0xf]
  %v85 = vld [vmem:[%s1 + $0x138] sm:$0xff]
  %v86 = vld [vmem:[%s1 + $0x140] sm:$0xf]
  %v87 = vld [vmem:[%s1 + $0x144] sm:$0x11]
  %v88 = vld [vmem:[%s1 + $0x14c] sm:$0x1]
  %v145 = vunpack.c.l.b16 %v33
  %v146 = vunpack.c.h.b16 %v33
  %v147 = vunpack.c.l.b16 %v34
  %v148 = vunpack.c.l.b16 %v35
  %v149 = vunpack.c.h.b16 %v35
  %v150 = vunpack.c.l.b16 %v36
  %v151 = vunpack.c.l.b16 %v37
  %v152 = vunpack.c.h.b16 %v37
  %v153 = vunpack.c.l.b16 %v38
  %v154 = vunpack.c.l.b16 %v39
  %v155 = vunpack.c.h.b16 %v39
  %v156 = vunpack.c.l.b16 %v40
  %v157 = vunpack.c.l.b16 %v41
  %v158 = vunpack.c.h.b16 %v41
  %v159 = vunpack.c.l.b16 %v42
  %v160 = vunpack.c.l.b16 %v43
  %v161 = vunpack.c.h.b16 %v43
  %v162 = vunpack.c.l.b16 %v44
  %v163 = vunpack.c.l.b16 %v45
  %v164 = vunpack.c.h.b16 %v45
  %v165 = vunpack.c.l.b16 %v46
  %v166 = vunpack.c.l.b16 %v47
  %v167 = vunpack.c.h.b16 %v47
  %v168 = vunpack.c.l.b16 %v48
  %v169 = vunpack.c.l.b16 %v49
  %v170 = vunpack.c.h.b16 %v49
  %v171 = vunpack.c.l.b16 %v50
  %v172 = vunpack.c.l.b16 %v51
  %v173 = vunpack.c.h.b16 %v51
  %v174 = vunpack.c.l.b16 %v52
  %v175 = vunpack.c.l.b16 %v53
  %v176 = vunpack.c.h.b16 %v53
  %v177 = vunpack.c.l.b16 %v54
  %v178 = vunpack.c.l.b16 %v55
  %v179 = vunpack.c.h.b16 %v55
  %v180 = vunpack.c.l.b16 %v56
  %v181 = vunpack.c.l.b16 %v57
  %v182 = vunpack.c.h.b16 %v57
  %v183 = vunpack.c.l.b16 %v58
  %v184 = vunpack.c.l.b16 %v59
  %v185 = vunpack.c.h.b16 %v59
  %v186 = vunpack.c.l.b16 %v60
  %v187 = vunpack.c.l.b16 %v61
  %v188 = vunpack.c.h.b16 %v61
  %v189 = vunpack.c.l.b16 %v62
  %v190 = vunpack.c.l.b16 %v63
  %v191 = vunpack.c.h.b16 %v63
  %v192 = vunpack.c.l.b16 %v64
  %v193 = vunpack.c.l.b16 %v65
  %v194 = vunpack.c.h.b16 %v65
  %v195 = vunpack.c.l.b16 %v66
  %v196 = vunpack.c.l.b16 %v67
  %v197 = vunpack.c.h.b16 %v67
  %v198 = vunpack.c.l.b16 %v68
  %v199 = vunpack.c.l.b16 %v69
  %v200 = vunpack.c.h.b16 %v69
  %v201 = vunpack.c.l.b16 %v70
  %v202 = vunpack.c.l.b16 %v71
  %v203 = vunpack.c.h.b16 %v71
  %v204 = vunpack.c.l.b16 %v72
  %v205 = vunpack.c.l.b16 %v73
  %v206 = vunpack.c.h.b16 %v73
  %v207 = vunpack.c.l.b16 %v74
  %v208 = vunpack.c.l.b16 %v75
  %v209 = vunpack.c.h.b16 %v75
  %v210 = vunpack.c.l.b16 %v76
  %v211 = vunpack.c.l.b16 %v77
  %v212 = vunpack.c.h.b16 %v77
  %v213 = vunpack.c.l.b16 %v78
  %v214 = vunpack.c.l.b16 %v79
  %v215 = vunpack.c.h.b16 %v79
  %v216 = vunpack.c.l.b16 %v80
  %v217 = vunpack.c.l.b16 %v81
  %v218 = vunpack.c.h.b16 %v81
  %v219 = vunpack.c.l.b16 %v82
  %v220 = vunpack.c.l.b16 %v83
  %v221 = vunpack.c.h.b16 %v83
  %v222 = vunpack.c.l.b16 %v84
  %v223 = vunpack.c.l.b16 %v85
  %v224 = vunpack.c.h.b16 %v85
  %v225 = vunpack.c.l.b16 %v86
  %v226 = vunpack.c.l.b16 %v87
  %v227 = vunpack.c.h.b16 %v87
  %v228 = vunpack.c.l.b16 %v88
  %v229 = vpack.c.b16 %v148, %v145
  %v230 = vpack.c.b16 %v149, %v146
  %v231 = vpack.c.b16 %v150, %v147
  %v232 = vpack.c.b16 %v154, %v151
  %v233 = vpack.c.b16 %v155, %v152
  %v234 = vpack.c.b16 %v156, %v153
  %v235 = vpack.c.b16 %v160, %v157
  %v236 = vpack.c.b16 %v161, %v158
  %v237 = vpack.c.b16 %v162, %v159
  %v238 = vpack.c.b16 %v166, %v163
  %v239 = vpack.c.b16 %v167, %v164
  %v240 = vpack.c.b16 %v168, %v165
  %v241 = vpack.c.b16 %v172, %v169
  %v242 = vpack.c.b16 %v173, %v170
  %v243 = vpack.c.b16 %v174, %v171
  %v244 = vpack.c.b16 %v178, %v175
  %v245 = vpack.c.b16 %v179, %v176
  %v246 = vpack.c.b16 %v180, %v177
  %v247 = vpack.c.b16 %v184, %v181
  %v248 = vpack.c.b16 %v185, %v182
  %v249 = vpack.c.b16 %v186, %v183
  %v250 = vpack.c.b16 %v190, %v187
  %v251 = vpack.c.b16 %v191, %v188
  %v252 = vpack.c.b16 %v192, %v189
  %v253 = vpack.c.b16 %v196, %v193
  %v254 = vpack.c.b16 %v197, %v194
  %v255 = vpack.c.b16 %v198, %v195
  %v256 = vpack.c.b16 %v202, %v199
  %v257 = vpack.c.b16 %v203, %v200
  %v258 = vpack.c.b16 %v204, %v201
  %v259 = vpack.c.b16 %v208, %v205
  %v260 = vpack.c.b16 %v209, %v206
  %v261 = vpack.c.b16 %v210, %v207
  %v262 = vpack.c.b16 %v214, %v211
  %v263 = vpack.c.b16 %v215, %v212
  %v264 = vpack.c.b16 %v216, %v213
  %v265 = vpack.c.b16 %v220, %v217
  %v266 = vpack.c.b16 %v221, %v218
  %v267 = vpack.c.b16 %v222, %v219
  %v268 = vpack.c.b16 %v226, %v223
  %v269 = vpack.c.b16 %v227, %v224
  %v270 = vpack.c.b16 %v228, %v225
  %vm310 = vcmask 728064
  %v312 = vsel %vm310, %v32, 0
  %vm314 = vcmask 1043456
  %vm315 = vcmask 1044480
  %v316 = vsel %vm314, 4294967295, 65535
  %v317 = vsel %vm315, %v316, 0
  %v319 = vand.u32 %v268, %v317
  %v322 = vand.u32 %v269, %v317
  %v325 = vand.u32 %v270, %v317
  %327 = vmatpush.bf16.msra.mxu0 %v250
  %328 = vmatpush.bf16.msra.mxu0 %v247
  %329 = vmatpush.bf16.msra.mxu0 %v244
  %330 = vmatpush.bf16.msra.mxu0 %v241
  %331 = vmatpush.bf16.msra.mxu0 %v238
  %332 = vmatpush.bf16.msra.mxu0 %v235
  %333 = vmatpush.bf16.msra.mxu0 %v232
  %334 = vmatpush.bf16.msra.mxu0 %v229
  %335 = vmatmul.bf16.gmra.mxu0 %v31
  %v336 = vpop.f32.mrf.mxu0
  %v337 = vadd.f32 0.0, %v336
  %v338 = vpop.f32.mrf.mxu0
  %339 = vdwg.mxu0
  %340 = vmatpush.bf16.msra.mxu0 0
  %341 = vmatpush.bf16.msra.mxu0 0
  %342 = vmatpush.bf16.msra.mxu0 %v319
  %343 = vmatpush.bf16.msra.mxu0 %v265
  %344 = vmatpush.bf16.msra.mxu0 %v262
  %345 = vmatpush.bf16.msra.mxu0 %v259
  %346 = vmatpush.bf16.msra.mxu0 %v256
  %347 = vmatpush.bf16.msra.mxu0 %v253
  %348 = vmatmul.bf16.gmra.mxu0 %v312
  %v349 = vpop.f32.mrf.mxu0
  %v350 = vadd.f32 %v337, %v349
  %v351 = vpop.f32.mrf.mxu0
  %352 = vdwg.mxu0
  %353 = vmatpush.bf16.msra.mxu0 %v251
  %354 = vmatpush.bf16.msra.mxu0 %v248
  %355 = vmatpush.bf16.msra.mxu0 %v245
  %356 = vmatpush.bf16.msra.mxu0 %v242
  %357 = vmatpush.bf16.msra.mxu0 %v239
  %358 = vmatpush.bf16.msra.mxu0 %v236
  %359 = vmatpush.bf16.msra.mxu0 %v233
  %360 = vmatpush.bf16.msra.mxu0 %v230
  %361 = vmatmul.bf16.gmra.mxu0 %v31
  %v362 = vpop.f32.mrf.mxu0
  %v363 = vadd.f32 0.0, %v362
  %v364 = vpop.f32.mrf.mxu0
  %365 = vdwg.mxu0
  %366 = vmatpush.bf16.msra.mxu0 0
  %367 = vmatpush.bf16.msra.mxu0 0
  %368 = vmatpush.bf16.msra.mxu0 %v322
  %369 = vmatpush.bf16.msra.mxu0 %v266
  %370 = vmatpush.bf16.msra.mxu0 %v263
  %371 = vmatpush.bf16.msra.mxu0 %v260
  %372 = vmatpush.bf16.msra.mxu0 %v257
  %373 = vmatpush.bf16.msra.mxu0 %v254
  %374 = vmatmul.bf16.gmra.mxu0 %v312
  %v375 = vpop.f32.mrf.mxu0
  %v376 = vadd.f32 %v363, %v375
  %v377 = vpop.f32.mrf.mxu0
  %378 = vdwg.mxu0
  %379 = vmatpush.bf16.msra.mxu0 %v252
  %380 = vmatpush.bf16.msra.mxu0 %v249
  %381 = vmatpush.bf16.msra.mxu0 %v246
  %382 = vmatpush.bf16.msra.mxu0 %v243
  %383 = vmatpush.bf16.msra.mxu0 %v240
  %384 = vmatpush.bf16.msra.mxu0 %v237
  %385 = vmatpush.bf16.msra.mxu0 %v234
  %386 = vmatpush.bf16.msra.mxu0 %v231
  %387 = vmatmul.bf16.gmra.mxu0 %v31
  %v388 = vpop.f32.mrf.mxu0
  %v389 = vadd.f32 0.0, %v388
  %v390 = vpop.f32.mrf.mxu0
  %391 = vdwg.mxu0
  %392 = vmatpush.bf16.msra.mxu0 0
  %393 = vmatpush.bf16.msra.mxu0 0
  %394 = vmatpush.bf16.msra.mxu0 %v325
  %395 = vmatpush.bf16.msra.mxu0 %v267
  %396 = vmatpush.bf16.msra.mxu0 %v264
  %397 = vmatpush.bf16.msra.mxu0 %v261
  %398 = vmatpush.bf16.msra.mxu0 %v258
  %399 = vmatpush.bf16.msra.mxu0 %v255
  %400 = vmatmul.bf16.gmra.mxu0 %v312
  %v401 = vpop.f32.mrf.mxu0
  %v402 = vadd.f32 %v389, %v401
  %v403 = vpop.f32.mrf.mxu0
  %404 = vdwg.mxu0
  %v406 = vperm.slane %v24, 0
  %v407 = vperm.slane %v24, 1
  %v408 = vperm.slane %v24, 2
  %v412 = vadd.f32 %v406, %v350
  %v413 = vadd.f32 %v407, %v376
  %v414 = vadd.f32 %v408, %v402
  %415 = vst [vmem:[%s5] sm:$0x3] %v412
  %416 = vst [vmem:[%s5 + $0x2] sm:$0x3] %v413
  %417 = vst [vmem:[%s5 + $0x4] sm:$0x3] %v414
  %v418 = vld [vmem:[%s4] sm:$0x1]
  %v419 = vld [vmem:[%s3] sm:$0xff]
  %v420 = vld [vmem:[%s3 + $0x8] sm:$0x3]
  %vm421 = vcmask 80896
  %v422 = vsel %vm421, %v23, 0
  %vm424 = vcmask 1041408
  %v426 = vsel %vm424, %v420, 0
  %428 = vmatpush.msra.mxu0 0.0
  %429 = vmatpush.msra.mxu0 0.0
  %430 = vmatpush.msra.mxu0 0.0
  %431 = vmatpush.msra.mxu0 0.0
  %432 = vmatpush.msra.mxu0 0.0
  %433 = vmatpush.msra.mxu0 0.0
  %434 = vmatpush.msra.mxu0 0.0
  %435 = vmatpush.msra.mxu0 0.0
  %436 = vmatpush.msra.mxu0 0.0
  %437 = vmatpush.msra.mxu0 0.0
  %438 = vmatpush.msra.mxu0 0.0
  %439 = vmatpush.msra.mxu0 0.0
  %440 = vmatpush.msra.mxu0 0.0
  %441 = vmatpush.msra.mxu0 0.0
  %442 = vmatpush.msra.mxu0 %v426
  %443 = vmatpush.msra.mxu0 %v419
  %444 = vmatmul.f32.gmra.mxu0 %v422
  %v445 = vpop.f32.mrf.mxu0
  %v446 = vadd.f32 0.0, %v445
  %447 = vdwg.mxu0
  %v449 = vperm.slane %v418, 0
  %v451 = vadd.f32 %v449, %v446
  %452 = vst [vmem:[%s6] sm:$0x3] %v451
  // Predicated region
  $region22: #{_smpl_forward.2} parent=0 // pred_check
    _
  $region23: #{_smpl_forward.2} parent=0 // pred_check_branch
    %454 = sbr.rel (0) target = $region25
  $region24: #{_smpl_forward.2} parent=0 // pred_region
    _
  $region25: #{_smpl_forward.2} parent=0 // pred_fallthru
    _
  // Predicated region
  $region26: #{_smpl_forward.2} parent=0 // pred_check
    _
  $region27: #{_smpl_forward.2} parent=0 // pred_check_branch
    %456 = sbr.rel (0) target = $region29
  $region28: #{_smpl_forward.2} parent=0 // pred_region
    _
  $region29: #{_smpl_forward.2} parent=0 // pred_fallthru
    _
  // Predicated region
  $region30: #{_smpl_forward.2} parent=0 // pred_check
    _
  $region31: #{_smpl_forward.2} parent=0 // pred_check_branch
    %458 = sbr.rel (0) target = $region33
  $region32: #{_smpl_forward.2} parent=0 // pred_region
    _
  $region33: #{_smpl_forward.2} parent=0 // pred_fallthru
    _
  // Predicated region
  $region34: #{_smpl_forward.2} parent=0 // pred_check
    _
  $region35: #{_smpl_forward.2} parent=0 // pred_check_branch
    %460 = sbr.rel (0) target = $region37
  $region36: #{_smpl_forward.2} parent=0 // pred_region
    _
  $region37: #{_smpl_forward.2} parent=0 // pred_fallthru
    _

// kernel: _smpl_forward.3
$region0: #{_smpl_forward.3}
  #allocation0 [shape = 'u32[]', space=smem, size = 0x4, offset = 0x4, fixed_abs, tag = 'smem constant byte address 0x4 - core index']
  #allocation1 [shape = 'u32[72,128]{1,0:T(1,128)}', space=vmem, size = 0x9000, scoped, tag = 'internal scratch']
  %s0 = inlined_call_operand.vmem [shape: f32[6,128], index: 0, kind: input, shape index: {}]
  %s1 = inlined_call_operand.vmem [shape: f32[24,128], index: 1, kind: input, shape index: {}]
  %s2 = inlined_call_operand.vmem [shape: f32[32,24], index: 2, kind: input, shape index: {}]
  %s3 = inlined_call_operand.vmem [shape: f32[8,128], index: 3, kind: output, shape index: {0}]
  %s4 = inlined_call_operand.vmem [shape: f32[32,128], index: 4, kind: output, shape index: {1}]
  %5 = xla_tuple %s3, %s4
  %s6 = sld [smem:[#allocation0]]
  $region30: #{_smpl_forward.3} parent=0
    _
  %s8 = ssub.s32 1, %s6
  %s9 = scalar_select 0, %s8, %s6
  // Predicated region
  $region2: #{_smpl_forward.3} parent=0 // pred_check
    _
  $region3: #{_smpl_forward.3} parent=0 // pred_check_branch
    %11 = sbr.rel (0) target = $region5
  $region4: #{_smpl_forward.3} parent=0 // pred_region
    _
  $region5: #{_smpl_forward.3} parent=0 // pred_fallthru
    _
  // Predicated region
  $region6: #{_smpl_forward.3} parent=0 // pred_check
    _
  $region7: #{_smpl_forward.3} parent=0 // pred_check_branch
    %13 = sbr.rel (0) target = $region9
  $region8: #{_smpl_forward.3} parent=0 // pred_region
    _
  $region9: #{_smpl_forward.3} parent=0 // pred_fallthru
    _
  // Predicated region
  $region10: #{_smpl_forward.3} parent=0 // pred_check
    _
  $region11: #{_smpl_forward.3} parent=0 // pred_check_branch
    %15 = sbr.rel (0) target = $region13
  $region12: #{_smpl_forward.3} parent=0 // pred_region
    _
  $region13: #{_smpl_forward.3} parent=0 // pred_fallthru
    _
  %v16 = vld [vmem:[%s2] sm:$0xff]
  %v17 = vld [vmem:[%s2 + $0x8] sm:$0xff]
  %v18 = vld [vmem:[%s2 + $0x10] sm:$0xff]
  %v19 = vld [vmem:[%s2 + $0x18] sm:$0xff]
  %v20 = vld [vmem:[%s1] sm:$0xff]
  %v21 = vld [vmem:[%s1 + $0x8] sm:$0xff]
  %v22 = vld [vmem:[%s1 + $0x10] sm:$0xff]
  %vm23 = vcmask 195584
  %v25 = vsel %vm23, %v16, 0
  %v28 = vsel %vm23, %v17, 0
  %v31 = vsel %vm23, %v18, 0
  %v34 = vsel %vm23, %v19, 0
  %36 = vmatpush.msra.mxu0 0.0
  %37 = vmatpush.msra.mxu0 0.0
  %38 = vmatpush.msra.mxu0 0.0
  %39 = vmatpush.msra.mxu0 0.0
  %40 = vmatpush.msra.mxu0 0.0
  %41 = vmatpush.msra.mxu0 0.0
  %42 = vmatpush.msra.mxu0 0.0
  %43 = vmatpush.msra.mxu0 0.0
  %44 = vmatpush.msra.mxu0 0.0
  %45 = vmatpush.msra.mxu0 0.0
  %46 = vmatpush.msra.mxu0 0.0
  %47 = vmatpush.msra.mxu0 0.0
  %48 = vmatpush.msra.mxu0 0.0
  %49 = vmatpush.msra.mxu0 %v22
  %50 = vmatpush.msra.mxu0 %v21
  %51 = vmatpush.msra.mxu0 %v20
  %52 = vmatmul.f32.gmra.mxu0 %v25
  %v53 = vpop.f32.mrf.mxu0
  %v54 = vadd.f32 0.0, %v53
  %55 = vmatmul.f32.gmra.mxu0 %v28
  %v56 = vpop.f32.mrf.mxu0
  %v57 = vadd.f32 0.0, %v56
  %58 = vmatmul.f32.gmra.mxu0 %v31
  %v59 = vpop.f32.mrf.mxu0
  %v60 = vadd.f32 0.0, %v59
  %61 = vmatmul.f32.gmra.mxu0 %v34
  %v62 = vpop.f32.mrf.mxu0
  %v63 = vadd.f32 0.0, %v62
  %64 = vdwg.mxu0
  %65 = vst [vmem:[%s4] sm:$0xff] %v54
  %66 = vst [vmem:[%s4 + $0x8] sm:$0xff] %v57
  %67 = vst [vmem:[%s4 + $0x10] sm:$0xff] %v60
  %68 = vst [vmem:[%s4 + $0x18] sm:$0xff] %v63
  %v69 = vld [vmem:[%s0] sm:$0x3f]
  %v71 = vrot.slane %v69, 6
  %v73 = vrot.slane %v69, 4
  %v75 = vrot.slane %v69, 2
  %vm77 = vcmask 1041408
  %v78 = vsel %vm77, %v69, %v71
  %vm79 = vcmask 1043456
  %v80 = vsel %vm79, %v78, %v73
  %vm81 = vcmask 1045504
  %v82 = vsel %vm81, %v80, %v75
  %v83 = vmul.f32 %v54, %v82
  %v84 = vadd.f32 %v63, %v83
  %v85 = vsel %vm77, %v75, %v69
  %v86 = vsel %vm79, %v85, %v71
  %v87 = vsel %vm81, %v86, %v73
  %v88 = vmul.f32 %v57, %v87
  %v89 = vadd.f32 %v84, %v88
  %v90 = vsel %vm77, %v73, %v75
  %v91 = vsel %vm79, %v90, %v69
  %v92 = vsel %vm81, %v91, %v71
  %v93 = vmul.f32 %v60, %v92
  %v94 = vadd.f32 %v89, %v93
  %95 = vst [vmem:[%s3] sm:$0xff] %v94
  // Predicated region
  $region14: #{_smpl_forward.3} parent=0 // pred_check
    _
  $region15: #{_smpl_forward.3} parent=0 // pred_check_branch
    %97 = sbr.rel (0) target = $region17
  $region16: #{_smpl_forward.3} parent=0 // pred_region
    _
  $region17: #{_smpl_forward.3} parent=0 // pred_fallthru
    _
  // Predicated region
  $region18: #{_smpl_forward.3} parent=0 // pred_check
    _
  $region19: #{_smpl_forward.3} parent=0 // pred_check_branch
    %99 = sbr.rel (0) target = $region21
  $region20: #{_smpl_forward.3} parent=0 // pred_region
    _
  $region21: #{_smpl_forward.3} parent=0 // pred_fallthru
    _
  // Predicated region
  $region22: #{_smpl_forward.3} parent=0 // pred_check
    _
  $region23: #{_smpl_forward.3} parent=0 // pred_check_branch
    %101 = sbr.rel (0) target = $region25
  $region24: #{_smpl_forward.3} parent=0 // pred_region
    _
  $region25: #{_smpl_forward.3} parent=0 // pred_fallthru
    _
  // Predicated region
  $region26: #{_smpl_forward.3} parent=0 // pred_check
    _
  $region27: #{_smpl_forward.3} parent=0 // pred_check_branch
    %103 = sbr.rel (0) target = $region29
  $region28: #{_smpl_forward.3} parent=0 // pred_region
    _
  $region29: #{_smpl_forward.3} parent=0 // pred_fallthru
    _

</llo_original>
